<compile_context>
chip_gen: v6e
topology: v6e:2x2x1
jax: 0.10.0
libtpu: 0.0.40
codegen_flags: <defaults>
</compile_context>

<pallas_src>
import functools

import jax
import jax.numpy as jnp
from jax.experimental import pallas as pl
from jax.experimental.pallas import tpu as pltpu


# ---------------------------------------------------------------------------
# Path A: whole table resident in VMEM, `chunk` rows gathered per grid step.
# ---------------------------------------------------------------------------
def _resident_gather_kernel(idx_ref, w_ref, o_ref, *, chunk):
    # idx_ref: (padded_batch,) int32 in SMEM (scalar prefetch)
    # w_ref  : (num_embeddings, 1, row)  whole table, resident in VMEM
    # o_ref  : (chunk, row)              lane-dense output tile for this step
    base = pl.program_id(0) * chunk
    for i in range(chunk):              # chunk is a small static Python int
        r = idx_ref[base + i]           # dynamic scalar index from SMEM
        o_ref[i, :] = w_ref[r][0]       # dynamic leading-axis row gather


def _lookup_table_resident(w3, idx, chunk, padded_batch, vmem_need_bytes):
    num_embeddings, _, row = w3.shape
    compiler_kwargs = dict(dimension_semantics=("parallel",))
    if vmem_need_bytes > (16 << 20):
        # Raise the scoped VMEM limit explicitly (v5e default is ~16 MiB);
        # cap well under v7x's 64 MiB physical VMEM.
        compiler_kwargs["vmem_limit_bytes"] = int(min(vmem_need_bytes, 48 << 20))

    grid_spec = pltpu.PrefetchScalarGridSpec(
        num_scalar_prefetch=1,
        grid=(padded_batch // chunk,),
        in_specs=[
            # Full table with a constant index_map -> DMA'd once, stays
            # resident in VMEM across all grid steps.
            pl.BlockSpec((num_embeddings, 1, row), lambda b, idx_ref: (0, 0, 0)),
        ],
        out_specs=pl.BlockSpec((chunk, row), lambda b, idx_ref: (b, 0)),
    )
    return pl.pallas_call(
        functools.partial(_resident_gather_kernel, chunk=chunk),
        grid_spec=grid_spec,
        out_shape=jax.ShapeDtypeStruct((padded_batch, row), w3.dtype),
        compiler_params=pltpu.CompilerParams(**compiler_kwargs),
    )(idx, w3)


# ---------------------------------------------------------------------------
# Path B: streamed per-row gather via data-dependent BlockSpec (big tables).
# ---------------------------------------------------------------------------
def _stream_gather_kernel(idx_ref, w_ref, o_ref):
    del idx_ref  # only consumed by the index_maps
    o_ref[...] = w_ref[...]


def _lookup_streamed(w3, idx, batch):
    num_embeddings, _, row = w3.shape
    grid_spec = pltpu.PrefetchScalarGridSpec(
        num_scalar_prefetch=1,
        grid=(batch,),
        in_specs=[
            pl.BlockSpec(
                (1, 1, row),
                lambda b, idx_ref: (idx_ref[b], 0, 0),
                pipeline_mode=pl.Buffered(3),   # hide tiny data-dependent DMAs
            ),
        ],
        out_specs=pl.BlockSpec((1, 1, row), lambda b, idx_ref: (b, 0, 0)),
    )
    out3 = pl.pallas_call(
        _stream_gather_kernel,
        grid_spec=grid_spec,
        out_shape=jax.ShapeDtypeStruct((batch, 1, row), w3.dtype),
        compiler_params=pltpu.CompilerParams(dimension_semantics=("parallel",)),
    )(idx, w3)
    return out3.reshape(batch, row)


# ---------------------------------------------------------------------------
# Public wrapper: out[b] = weight[indices[b]]
# ---------------------------------------------------------------------------
def timestep_embedding_lookup(weight: jax.Array, indices: jax.Array) -> jax.Array:
    """weight: (num_embeddings, time_step, embedding_dim); indices: (batch,) int.

    Returns (batch, time_step, embedding_dim), same dtype as weight.
    """
    num_embeddings, time_step, embedding_dim = weight.shape
    batch = indices.shape[0]
    row = time_step * embedding_dim
    itemsize = weight.dtype.itemsize

    # Lane-dense flatten of the trailing axes (last block dim = row).
    w3 = weight.reshape(num_embeddings, 1, row)

    # nn.Embedding raises on out-of-range indices; clamp instead so a bad
    # index can never produce an out-of-range data-dependent address.
    idx = jnp.clip(indices.astype(jnp.int32), 0, num_embeddings - 1)

    # VMEM footprint of the resident table (each (1, row) row pads to a full
    # sublane tile: ~32 bytes per lane regardless of dtype) -> conservative.
    resident_table_bytes = num_embeddings * row * 32

    if resident_table_bytes <= (12 << 20):
        # ---- Path A: whole table cached in VMEM, chunked batch gather. ----
        row_bytes = row * itemsize
        chunk_cap = int(max(8, min(64, (2 << 20) // max(row_bytes, 1))))
        if batch <= chunk_cap:
            chunk, padded_batch, idx_p = batch, batch, idx
        else:
            chunk = (chunk_cap // 8) * 8
            padded_batch = -(-batch // chunk) * chunk
            idx_p = jnp.pad(idx, (0, padded_batch - batch))
        vmem_need = 2 * resident_table_bytes + 2 * chunk * row_bytes + (1 << 20)
        out2d = _lookup_table_resident(w3, idx_p, chunk, padded_batch, vmem_need)
        out2d = out2d[:batch]
    else:
        # ---- Path B: table too big to cache (e.g. v7x's 64 MiB VMEM). -----
        out2d = _lookup_streamed(w3, idx, batch)

    return out2d.reshape(batch, time_step, embedding_dim)


def init_timestep_embedding_weight(key, num_embeddings, time_step, embedding_dim,
                                   padding_idx=None, dtype=jnp.float32):
    """Mirrors reset_parameters(): normal init + zero the padding row."""
    w = jax.random.normal(key, (num_embeddings, time_step, embedding_dim), dtype=dtype)
    if padding_idx is not None:
        if padding_idx < 0:
            padding_idx = num_embeddings + padding_idx
        w = w.at[padding_idx].set(0.0)
    return w
    # TODO(synk): max_norm renorm / scale_grad_by_freq / sparse grads are
    # nn.Embedding training-time semantics with no effect on this forward pass.


if __name__ == "__main__":
    num_embeddings = 10   # e.g. number of diffusion timestep buckets
    time_step = 8
    embedding_dim = 32
    batch = 2
    padding_idx = 0

    key = jax.random.PRNGKey(0)
    kw, ki = jax.random.split(key)

    weight = init_timestep_embedding_weight(
        kw, num_embeddings, time_step, embedding_dim,
        padding_idx=padding_idx, dtype=jnp.float32)
    indices = jax.random.randint(ki, (batch,), 0, num_embeddings, dtype=jnp.int32)

    out = timestep_embedding_lookup(weight, indices)
    out = jax.block_until_ready(out)

    # Correctness check against plain-JAX gather.
    ref = weight[indices]
    assert out.shape == (batch, time_step, embedding_dim), out.shape
    assert jnp.allclose(out, ref), "mismatch vs reference gather"

    print("KERNEL_OK")
</pallas_src>

<mosaic_0001>
module attributes {stable_mosaic.version = 11 : i64} {
  func.func @_resident_gather_kernel(%arg0: i32, %arg1: memref<2xi32, #tpu.memory_space<smem>>, %arg2: memref<10x1x256xf32, #tpu.memory_space<vmem>>, %arg3: memref<2x256xf32, #tpu.memory_space<vmem>>) attributes {dimension_semantics = [#tpu.dimension_semantics<parallel>], iteration_bounds = array<i64: 1>, scalar_prefetch = 1 : i64, scratch_operands = 0 : i64, tpu.core_type = #tpu.core_type<tc>, window_params = [{pipeline_mode = #tpu.pipeline_mode<synchronous>, transform_indices = @transform_0, window_bounds = array<i64: 10, 1, 256>}, {transform_indices = @transform_1, window_bounds = array<i64: 2, 256>}]} {
    %c2_i32 = arith.constant 2 : i32
    %0 = arith.muli %arg0, %c2_i32 : i32
    %c0_i32 = arith.constant 0 : i32
    %1 = arith.addi %0, %c0_i32 : i32
    %2 = arith.index_cast %1 : i32 to index
    %3 = memref.load %arg1[%2] : memref<2xi32, #tpu.memory_space<smem>>
    %4 = arith.index_cast %3 : i32 to index
    %c0 = arith.constant 0 : index
    %c0_0 = arith.constant 0 : index
    %5 = vector.load %arg2[%4, %c0, %c0_0] : memref<10x1x256xf32, #tpu.memory_space<vmem>>, vector<1x1x256xf32>
    %6 = vector.shape_cast %5 : vector<1x1x256xf32> to vector<1x256xf32>
    %7 = vector.shape_cast %6 : vector<1x256xf32> to vector<256xf32>
    %c0_1 = arith.constant 0 : index
    %c0_2 = arith.constant 0 : index
    %8 = vector.load %arg3[%c0_1, %c0_2] : memref<2x256xf32, #tpu.memory_space<vmem>>, vector<1x256xf32>
    %9 = vector.shape_cast %8 : vector<1x256xf32> to vector<256xf32>
    %10 = vector.shape_cast %7 : vector<256xf32> to vector<1x256xf32>
    tpu.vector_store %arg3[%c0_1, %c0_2], %10 {strides = array<i32>} : memref<2x256xf32, #tpu.memory_space<vmem>>, vector<1x256xf32>,
    %c1_i32 = arith.constant 1 : i32
    %11 = arith.addi %0, %c1_i32 : i32
    %12 = arith.index_cast %11 : i32 to index
    %13 = memref.load %arg1[%12] : memref<2xi32, #tpu.memory_space<smem>>
    %14 = arith.index_cast %13 : i32 to index
    %c0_3 = arith.constant 0 : index
    %c0_4 = arith.constant 0 : index
    %15 = vector.load %arg2[%14, %c0_3, %c0_4] : memref<10x1x256xf32, #tpu.memory_space<vmem>>, vector<1x1x256xf32>
    %16 = vector.shape_cast %15 : vector<1x1x256xf32> to vector<1x256xf32>
    %17 = vector.shape_cast %16 : vector<1x256xf32> to vector<256xf32>
    %c1 = arith.constant 1 : index
    %c0_5 = arith.constant 0 : index
    %18 = vector.load %arg3[%c1, %c0_5] : memref<2x256xf32, #tpu.memory_space<vmem>>, vector<1x256xf32>
    %19 = vector.shape_cast %18 : vector<1x256xf32> to vector<256xf32>
    %20 = vector.shape_cast %17 : vector<256xf32> to vector<1x256xf32>
    tpu.vector_store %arg3[%c1, %c0_5], %20 {strides = array<i32>} : memref<2x256xf32, #tpu.memory_space<vmem>>, vector<1x256xf32>,
    return
  }
  func.func @transform_0(%arg0: i32, %arg1: memref<2xi32, #tpu.memory_space<smem>>) -> (i32, i32, i32) {
    %c0_i32 = arith.constant 0 : i32
    %c0_i32_0 = arith.constant 0 : i32
    %c0_i32_1 = arith.constant 0 : i32
    %c0_i32_2 = arith.constant 0 : i32
    return %c0_i32, %c0_i32_0, %c0_i32_1 : i32, i32, i32
  }
  func.func @transform_1(%arg0: i32, %arg1: memref<2xi32, #tpu.memory_space<smem>>) -> (i32, i32) {
    %c0_i32 = arith.constant 0 : i32
    %c0_i32_0 = arith.constant 0 : i32
    return %arg0, %c0_i32 : i32, i32
  }
}

</mosaic_0001>

<llo_original>
// kernel: tpu_custom_call.1
$region0: #{tpu_custom_call.1}
  #allocation0 [shape = 'u32[]', space=smem, size = 0x4, offset = 0x4, fixed_abs, tag = 'smem constant byte address 0x4 - core index']
  #allocation1 [shape = 'u32[144,128]{1,0:T(1,128)}', space=vmem, size = 0x12000, scoped, tag = 'internal scratch']
  #allocation2 [shape = 's32[1]{0}', space=sflag, size = 0x4, scoped, tag = 'scoped memory for tpu_custom_call.1']
  #allocation3 [shape = 'u8[512]{0}', space=smem, size = 0x200, scoped, tag = 'prefetched SMEM operand 0']
  %s0 = inlined_call_operand.hbm [shape: s32[2], index: 0, kind: input, shape index: {}]
  %s1 = inlined_call_operand.hbm [shape: f32[10,1,256], index: 1, kind: input, shape index: {}]
  %s2 = inlined_call_operand.hbm [shape: f32[2,256], index: 2, kind: output, shape index: {}]
  %s3 = sld [smem:[#allocation0]]
  $region18: #{tpu_custom_call.1} parent=0
    _
  %s5 = ssub.s32 1, %s3
  %s6 = scalar_select 0, %s5, %s3
  %8 = dma.hbm_to_smem %s0, 16, [#allocation3], [#allocation2]
  %9 = dma.done [#allocation2], 16
  %10 = sfence
  $region1: #{tpu_custom_call.1} parent=0
    #allocation4 [shape = 'u8[10240]{0}', space=vmem, size = 0x2800, scoped, tag = 'input window, operand 1, single buffered']
    #allocation5 [shape = 's32[1]{0}', space=sflag, size = 0x4, scoped, tag = 'scoped memory for tpu_custom_call.1']
    #allocation6 [shape = 's32[1]{0}', space=sflag, size = 0x4, scoped, tag = 'scoped memory for tpu_custom_call.1']
    #allocation7 [shape = 'u8[2048]{0}', space=vmem, size = 0x800, scoped, tag = 'output window, operand 0, single buffered']
    %11 = vsyncpa [#allocation5], 0
    %12 = vsyncpa [#allocation6], 0
    // Predicated region
    $region2: #{tpu_custom_call.1} parent=1 // pred_check
      _
    $region3: #{tpu_custom_call.1} parent=1 // pred_check_branch
      %14 = sbr.rel (0) target = $region5
    $region4: #{tpu_custom_call.1} parent=1 // pred_region
      %s16 = ssub.s32 320, 320
      %17 = vsyncadd [#allocation5], %s16
      %s18 = sshll.u32 [#allocation4], 4
      %s19 = int_to_ptr.vmem [resolvable:$true] %s18
      %24 = dma.hbm_to_vmem [thread:$0]  %s1, 320, %s19, [#allocation5], 32, 32, 2
    $region5: #{tpu_custom_call.1} parent=1 // pred_fallthru
      _
    // Predicated region
    $region6: #{tpu_custom_call.1} parent=1 // pred_check
      _
    $region7: #{tpu_custom_call.1} parent=1 // pred_check_branch
      %26 = sbr.rel (0) target = $region9
    $region8: #{tpu_custom_call.1} parent=1 // pred_region
      %27 = dma.done [#allocation5], 320
    $region9: #{tpu_custom_call.1} parent=1 // pred_fallthru
      _
    %s28 = smul.u32 0, 2
    %s29 = sld [smem:[#allocation3 + %s28]]
    %s30 = smul.u32 %s29, 2
    %s31 = scalar_lea.vmem [#allocation4], %s30
    %v32 = vld [vmem:[%s31] sm:$0x3]
    %v33 = vlaneseq
    %vm34 = vcmp.ge.s32.totalorder %v33, 0
    %vm35 = vcmp.lt.s32.totalorder %v33, 256
    %vm36 = vmand %vm34, %vm35
    %37 = vst.msk [vmem:[#allocation7] ss:$2 sm:$0x3] %vm36, %v32
    %s38 = sadd.s32 %s28, 1
    %s39 = sld [smem:[#allocation3 + %s38]]
    %s40 = smul.u32 %s39, 2
    %s41 = scalar_lea.vmem [#allocation4], %s40
    %v42 = vld [vmem:[%s41] sm:$0x3]
    %s43 = scalar_lea.vmem [#allocation7], 1
    %44 = vst.msk [vmem:[%s43] ss:$2 sm:$0x3] %vm36, %v42
    // Predicated region
    $region10: #{tpu_custom_call.1} parent=1 // pred_check
      _
    $region11: #{tpu_custom_call.1} parent=1 // pred_check_branch
      %46 = sbr.rel (0) target = $region13
    $region12: #{tpu_custom_call.1} parent=1 // pred_region
      %s48 = ssub.s32 64, 64
      %49 = vsyncadd [#allocation6], %s48
      %s51 = sshll.u32 [#allocation7], 4
      %s52 = int_to_ptr.vmem [resolvable:$true] %s51
      %54 = dma.vmem_to_hbm [thread:$0]  %s52, 64, %s2, [#allocation6]
    $region13: #{tpu_custom_call.1} parent=1 // pred_fallthru
      _
    // Predicated region
    $region14: #{tpu_custom_call.1} parent=1 // pred_check
      _
    $region15: #{tpu_custom_call.1} parent=1 // pred_check_branch
      %56 = sbr.rel (0) target = $region17
    $region16: #{tpu_custom_call.1} parent=1 // pred_region
      %57 = dma.done [#allocation6], 64
    $region17: #{tpu_custom_call.1} parent=1 // pred_fallthru
      _
    %58 = vsyncpa [#allocation5], 1
    %59 = vsyncpa [#allocation6], 1

</llo_original>
